<compile_context>
chip_gen: v5e
topology: v5e:2x2
jax: 0.10.0
libtpu: 0.0.40
codegen_flags: <defaults>
</compile_context>

<pallas_src>
import jax
import jax.numpy as jnp
from jax.experimental import pallas as pl
from jax.experimental.pallas import tpu as pltpu


def _round_up(x, m):
    return (x + m - 1) // m * m


# ----------------------------------------------------------------------------
# Pallas kernel: fused 3-layer MLP
# ----------------------------------------------------------------------------
def _value_net_kernel(x_ref, w1_ref, b1_ref, w2_ref, b2_ref, w3_ref, b3_ref,
                      o_ref):
    # In-kernel bf16 cast (cheap VPU pass hidden under the MXU); keeps HBM
    # traffic at a single f32 read of the state.
    x = x_ref[...].astype(jnp.bfloat16)                                # (TB, S)
    h1 = jnp.dot(x, w1_ref[...], preferred_element_type=jnp.float32)   # MXU, f32 acc
    h1 = jnp.maximum(h1 + b1_ref[...], 0.0)                            # f32 VPU (v5e-safe)
    h2 = jnp.dot(h1.astype(jnp.bfloat16), w2_ref[...],
                 preferred_element_type=jnp.float32)                   # MXU, f32 acc
    h2 = jnp.maximum(h2 + b2_ref[...], 0.0)                            # (TB, H) f32
    # Final 64 -> 1 projection on the VPU + XLU (skip the 1-lane MXU matmul).
    # TODO(synk): if the XLU relayout into the lane-dense (1, TB) row ever
    # dominates at very large TB, restructure feature-major (H on sublanes).
    v = jnp.sum(h2 * w3_ref[...], axis=-1)                             # (TB,)
    o_ref[...] = (v[None, :] + b3_ref[0, 0]).astype(o_ref.dtype)       # (1, TB)


def value_net_forward(state, params, *, batch_tile=2048):
    """Pallas forward pass of ValueNet.  Returns shape (B,) = main(state)[:, 0]."""
    w1, b1, w2, b2, w3, b3 = params
    B, S = state.shape
    H = w1.shape[1]

    # Tile policy (no jnp.pad, no wrapper cast => one HBM pass over the state):
    #   * B < 256  -> a single full-extent tile (block shape == array dims).
    #   * B >= 256 -> lane-aligned tiles (multiple of 128), capped at
    #     `batch_tile`, sized so there are always >= 2 tiles (v7x dual-TC
    #     sharding); a ragged tail block is masked by Pallas on store.
    if B < 256:
        TB = B
    else:
        two_tile_cap = max(128, (pl.cdiv(B, 2) // 128) * 128)
        TB = min(_round_up(batch_tile, 128), two_tile_cap)
    num_tiles = pl.cdiv(B, TB)

    w1b = w1.astype(jnp.bfloat16)
    w2b = w2.astype(jnp.bfloat16)
    w3_row = w3.T.astype(jnp.float32)            # (1, H), consumed on the VPU
    b1f = b1.astype(jnp.float32)
    b2f = b2.astype(jnp.float32)
    b3f = b3.reshape(1, 1).astype(jnp.float32)   # SMEM scalar

    out = pl.pallas_call(
        _value_net_kernel,
        out_shape=jax.ShapeDtypeStruct((1, B), jnp.float32),
        grid=(num_tiles,),
        in_specs=[
            pl.BlockSpec((TB, S), lambda i: (i, 0)),   # state tile (f32, cast in-kernel)
            pl.BlockSpec((S, H), lambda i: (0, 0)),    # W1 (bf16), resident
            pl.BlockSpec((1, H), lambda i: (0, 0)),    # b1 (f32)
            pl.BlockSpec((H, H), lambda i: (0, 0)),    # W2 (bf16), resident
            pl.BlockSpec((1, H), lambda i: (0, 0)),    # b2 (f32)
            pl.BlockSpec((1, H), lambda i: (0, 0)),    # W3 row (f32)
            pl.BlockSpec(memory_space=pltpu.MemorySpace.SMEM),  # b3 scalar
        ],
        out_specs=pl.BlockSpec((1, TB), lambda i: (0, i)),      # lane-dense row
        compiler_params=pltpu.CompilerParams(
            dimension_semantics=("parallel",),
            vmem_limit_bytes=32 * 1024 * 1024),
    )(state.astype(jnp.float32), w1b, b1f, w2b, b2f, w3_row, b3f)

    return out[0]


# ----------------------------------------------------------------------------
# Deterministic parameter init (orthogonal, gain=sqrt(2); biases = 0),
# matching nn.init.orthogonal_ + constant_(0) from the reference `init`.
# ----------------------------------------------------------------------------
def _orthogonal(key, out_dim, in_dim, gain):
    # Same scheme as torch.nn.init.orthogonal_: QR of a normal matrix,
    # sign-corrected by diag(R), scaled by gain. Returned transposed (in, out).
    rows, cols = out_dim, in_dim
    flat = jax.random.normal(key, (max(rows, cols), min(rows, cols)),
                             dtype=jnp.float32)
    q, r = jnp.linalg.qr(flat)
    q = q * jnp.sign(jnp.diag(r))
    if rows < cols:
        q = q.T
    w = gain * q[:rows, :cols]          # (out, in) — PyTorch layout
    return w.T.astype(jnp.float32)      # (in, out) — kernel layout


def make_params(key, s_dim, hidden=64):
    gain = float(jnp.sqrt(2.0))         # nn.init.calculate_gain('relu')
    k1, k2, k3 = jax.random.split(key, 3)
    w1 = _orthogonal(k1, hidden, s_dim, gain)      # (s_dim, hidden)
    b1 = jnp.zeros((1, hidden), jnp.float32)
    w2 = _orthogonal(k2, hidden, hidden, gain)     # (hidden, hidden)
    b2 = jnp.zeros((1, hidden), jnp.float32)
    w3 = _orthogonal(k3, 1, hidden, gain)          # (hidden, 1)
    b3 = jnp.zeros((1, 1), jnp.float32)
    return (w1, b1, w2, b2, w3, b3)


# Pure-JAX (f32) reference for sanity checks.
def _ref_forward(state, params):
    w1, b1, w2, b2, w3, b3 = params
    h1 = jnp.maximum(state @ w1 + b1, 0.0)
    h2 = jnp.maximum(h1 @ w2 + b2, 0.0)
    return (h2 @ w3 + b3)[:, 0]


if __name__ == "__main__":
    key = jax.random.PRNGKey(0)
    k_param, k_state1, k_state2 = jax.random.split(key, 3)

    s_dim, hidden = 16, 64
    params = make_params(k_param, s_dim, hidden)

    # Small single-tile case (matches the module's toy usage).
    state_small = jax.random.normal(k_state1, (8, s_dim), dtype=jnp.float32)
    v_small = jax.block_until_ready(value_net_forward(state_small, params))
    ref_small = _ref_forward(state_small, params)
    assert v_small.shape == (8,)
    assert jnp.allclose(v_small, ref_small, atol=5e-2, rtol=5e-2)

    # Multi-tile case: >=2 parallel tiles plus a ragged (masked) tail block.
    state_big = jax.random.normal(k_state2, (300, s_dim), dtype=jnp.float32)
    v_big = jax.block_until_ready(
        value_net_forward(state_big, params, batch_tile=128))
    ref_big = _ref_forward(state_big, params)
    assert v_big.shape == (300,)
    assert jnp.allclose(v_big, ref_big, atol=5e-2, rtol=5e-2)

    print("KERNEL_OK")
</pallas_src>

<mosaic_0001>
module attributes {stable_mosaic.version = 11 : i64} {
  func.func @_value_net_kernel(%arg0: i32, %arg1: memref<8x16xf32, #tpu.memory_space<vmem>>, %arg2: memref<16x64xbf16, #tpu.memory_space<vmem>>, %arg3: memref<1x64xf32, #tpu.memory_space<vmem>>, %arg4: memref<64x64xbf16, #tpu.memory_space<vmem>>, %arg5: memref<1x64xf32, #tpu.memory_space<vmem>>, %arg6: memref<1x64xf32, #tpu.memory_space<vmem>>, %arg7: memref<1x1xf32, #tpu.memory_space<smem>>, %arg8: memref<1x8xf32, #tpu.memory_space<vmem>>) attributes {dimension_semantics = [#tpu.dimension_semantics<parallel>], iteration_bounds = array<i64: 1>, scalar_prefetch = 0 : i64, scratch_operands = 0 : i64, tpu.core_type = #tpu.core_type<tc>, window_params = [{transform_indices = @transform_0, window_bounds = array<i64: 8, 16>}, {pipeline_mode = #tpu.pipeline_mode<synchronous>, transform_indices = @transform_1, window_bounds = array<i64: 16, 64>}, {pipeline_mode = #tpu.pipeline_mode<synchronous>, transform_indices = @transform_2, window_bounds = array<i64: 1, 64>}, {pipeline_mode = #tpu.pipeline_mode<synchronous>, transform_indices = @transform_3, window_bounds = array<i64: 64, 64>}, {pipeline_mode = #tpu.pipeline_mode<synchronous>, transform_indices = @transform_4, window_bounds = array<i64: 1, 64>}, {pipeline_mode = #tpu.pipeline_mode<synchronous>, transform_indices = @transform_5, window_bounds = array<i64: 1, 64>}, {transform_indices = @transform_6, window_bounds = array<i64: 1, 1>}, {transform_indices = @transform_7, window_bounds = array<i64: 1, 8>}]} {
    %c0 = arith.constant 0 : index
    %c0_0 = arith.constant 0 : index
    %0 = vector.load %arg1[%c0, %c0_0] : memref<8x16xf32, #tpu.memory_space<vmem>>, vector<8x16xf32>
    %1 = arith.truncf %0 : vector<8x16xf32> to vector<8x16xbf16>
    %c0_1 = arith.constant 0 : index
    %c0_2 = arith.constant 0 : index
    %2 = vector.load %arg2[%c0_1, %c0_2] : memref<16x64xbf16, #tpu.memory_space<vmem>>, vector<16x64xbf16>
    %cst = arith.constant dense<0.000000e+00> : vector<8x64xf32>
    %3 = tpu.matmul %1, %2, %cst {dimension_numbers = #tpu.dot_dimension_numbers<[1], [0], [0], [1], [0, 0, 1, 1], [], []>} : vector<8x16xbf16>, vector<16x64xbf16>, vector<8x64xf32> -> vector<8x64xf32>
    %c0_3 = arith.constant 0 : index
    %c0_4 = arith.constant 0 : index
    %4 = vector.load %arg3[%c0_3, %c0_4] : memref<1x64xf32, #tpu.memory_space<vmem>>, vector<1x64xf32>
    %5 = vector.broadcast %4 : vector<1x64xf32> to vector<8x64xf32>
    %6 = arith.addf %3, %5 : vector<8x64xf32>
    %cst_5 = arith.constant 0.000000e+00 : f32
    %7 = vector.broadcast %cst_5 : f32 to vector<8x64xf32>
    %8 = arith.maximumf %6, %7 : vector<8x64xf32>
    %9 = arith.truncf %8 : vector<8x64xf32> to vector<8x64xbf16>
    %c0_6 = arith.constant 0 : index
    %c0_7 = arith.constant 0 : index
    %10 = vector.load %arg4[%c0_6, %c0_7] : memref<64x64xbf16, #tpu.memory_space<vmem>>, vector<64x64xbf16>
    %cst_8 = arith.constant dense<0.000000e+00> : vector<8x64xf32>
    %11 = tpu.matmul %9, %10, %cst_8 {dimension_numbers = #tpu.dot_dimension_numbers<[1], [0], [0], [1], [0, 0, 1, 1], [], []>} : vector<8x64xbf16>, vector<64x64xbf16>, vector<8x64xf32> -> vector<8x64xf32>
    %c0_9 = arith.constant 0 : index
    %c0_10 = arith.constant 0 : index
    %12 = vector.load %arg5[%c0_9, %c0_10] : memref<1x64xf32, #tpu.memory_space<vmem>>, vector<1x64xf32>
    %13 = vector.broadcast %12 : vector<1x64xf32> to vector<8x64xf32>
    %14 = arith.addf %11, %13 : vector<8x64xf32>
    %cst_11 = arith.constant 0.000000e+00 : f32
    %15 = vector.broadcast %cst_11 : f32 to vector<8x64xf32>
    %16 = arith.maximumf %14, %15 : vector<8x64xf32>
    %c0_12 = arith.constant 0 : index
    %c0_13 = arith.constant 0 : index
    %17 = vector.load %arg6[%c0_12, %c0_13] : memref<1x64xf32, #tpu.memory_space<vmem>>, vector<1x64xf32>
    %18 = vector.broadcast %17 : vector<1x64xf32> to vector<8x64xf32>
    %19 = arith.mulf %16, %18 : vector<8x64xf32>
    %cst_14 = arith.constant dense<0.000000e+00> : vector<8xf32>
    %20 = vector.multi_reduction <add>, %19, %cst_14 [1] : vector<8x64xf32> to vector<8xf32>
    %21 = vector.shape_cast %20 : vector<8xf32> to vector<1x8xf32>
    %c0_15 = arith.constant 0 : index
    %c0_16 = arith.constant 0 : index
    %22 = memref.load %arg7[%c0_15, %c0_16] : memref<1x1xf32, #tpu.memory_space<smem>>
    %23 = vector.broadcast %22 : f32 to vector<1x8xf32>
    %24 = arith.addf %21, %23 : vector<1x8xf32>
    %c0_17 = arith.constant 0 : index
    %c0_18 = arith.constant 0 : index
    %25 = vector.load %arg8[%c0_17, %c0_18] : memref<1x8xf32, #tpu.memory_space<vmem>>, vector<1x8xf32>
    tpu.vector_store %arg8[%c0_17, %c0_18], %24 {strides = array<i32>} : memref<1x8xf32, #tpu.memory_space<vmem>>, vector<1x8xf32>,
    return
  }
  func.func @transform_0(%arg0: i32) -> (i32, i32) {
    %c0_i32 = arith.constant 0 : i32
    %c0_i32_0 = arith.constant 0 : i32
    return %arg0, %c0_i32 : i32, i32
  }
  func.func @transform_1(%arg0: i32) -> (i32, i32) {
    %c0_i32 = arith.constant 0 : i32
    %c0_i32_0 = arith.constant 0 : i32
    %c0_i32_1 = arith.constant 0 : i32
    return %c0_i32, %c0_i32_0 : i32, i32
  }
  func.func @transform_2(%arg0: i32) -> (i32, i32) {
    %c0_i32 = arith.constant 0 : i32
    %c0_i32_0 = arith.constant 0 : i32
    %c0_i32_1 = arith.constant 0 : i32
    return %c0_i32, %c0_i32_0 : i32, i32
  }
  func.func @transform_3(%arg0: i32) -> (i32, i32) {
    %c0_i32 = arith.constant 0 : i32
    %c0_i32_0 = arith.constant 0 : i32
    %c0_i32_1 = arith.constant 0 : i32
    return %c0_i32, %c0_i32_0 : i32, i32
  }
  func.func @transform_4(%arg0: i32) -> (i32, i32) {
    %c0_i32 = arith.constant 0 : i32
    %c0_i32_0 = arith.constant 0 : i32
    %c0_i32_1 = arith.constant 0 : i32
    return %c0_i32, %c0_i32_0 : i32, i32
  }
  func.func @transform_5(%arg0: i32) -> (i32, i32) {
    %c0_i32 = arith.constant 0 : i32
    %c0_i32_0 = arith.constant 0 : i32
    %c0_i32_1 = arith.constant 0 : i32
    return %c0_i32, %c0_i32_0 : i32, i32
  }
  func.func @transform_6(%arg0: i32) -> (i32, i32) {
    %c0_i32 = arith.constant 0 : i32
    %c0_i32_0 = arith.constant 0 : i32
    %c0_i32_1 = arith.constant 0 : i32
    return %c0_i32, %c0_i32_0 : i32, i32
  }
  func.func @transform_7(%arg0: i32) -> (i32, i32) {
    %c0_i32 = arith.constant 0 : i32
    %c0_i32_0 = arith.constant 0 : i32
    return %c0_i32, %arg0 : i32, i32
  }
}

</mosaic_0001>

<llo_original>
// kernel: tpu_custom_call.1
$region0: #{tpu_custom_call.1}
  #allocation0 [shape = 'u32[]', space=smem, size = 0x4, offset = 0x4, fixed_abs, tag = 'smem constant byte address 0x4 - core index']
  #allocation1 [shape = 'u32[72,128]{1,0:T(1,128)}', space=vmem, size = 0x9000, scoped, tag = 'internal scratch']
  #allocation2 [shape = 'f32[1,1]{1,0:T(1,128)S(6)}', space=smem, size = 0x200, scoped, tag = 'scoped memory for tpu_custom_call.1']
  %s0 = inlined_call_operand.hbm [shape: f32[8,16], index: 0, kind: input, shape index: {}]
  %s1 = inlined_call_operand.hbm [shape: bf16[16,64], index: 1, kind: input, shape index: {}]
  %s2 = inlined_call_operand.vmem [shape: f32[1,64], index: 2, kind: input, shape index: {}]
  %s3 = inlined_call_operand.hbm [shape: bf16[64,64], index: 3, kind: input, shape index: {}]
  %s4 = inlined_call_operand.vmem [shape: f32[1,64], index: 4, kind: input, shape index: {}]
  %s5 = inlined_call_operand.vmem [shape: f32[1,64], index: 5, kind: input, shape index: {}]
  %s6 = inlined_call_operand.<no memory space> [shape: f32[1,1], index: 6, kind: input, shape index: {}]
  %s7 = inlined_call_operand.hbm [shape: f32[1,8], index: 7, kind: output, shape index: {}]
  %s8 = sld [smem:[#allocation0]]
  $region50: #{tpu_custom_call.1} parent=0
    _
  %s10 = ssub.s32 1, %s8
  %s11 = scalar_select 0, %s10, %s8
  %12 = sst [smem:[#allocation2]] %s6
  $region1: #{tpu_custom_call.1} parent=0
    #allocation3 [shape = 'u8[4096]{0}', space=vmem, size = 0x1000, scoped, tag = 'input window, operand 0, single buffered']
    #allocation4 [shape = 's32[1]{0}', space=sflag, size = 0x4, scoped, tag = 'scoped memory for tpu_custom_call.1']
    #allocation5 [shape = 's32[1]{0}', space=sflag, size = 0x4, scoped, tag = 'scoped memory for tpu_custom_call.1']
    #allocation6 [shape = 'u8[4096]{0}', space=vmem, size = 0x1000, scoped, tag = 'input window, operand 1, single buffered']
    #allocation7 [shape = 's32[1]{0}', space=sflag, size = 0x4, scoped, tag = 'scoped memory for tpu_custom_call.1']
    #allocation8 [shape = 'u8[16384]{0}', space=vmem, size = 0x4000, scoped, tag = 'input window, operand 3, single buffered']
    #allocation9 [shape = 'u8[512]{0}', space=vmem, size = 0x400, scoped, tag = 'output window, operand 0, single buffered']
    %13 = vsyncpa [#allocation4], 0
    %14 = vsyncpa [#allocation7], 0
    %15 = vsyncpa [#allocation5], 0
    // Predicated region
    $region2: #{tpu_custom_call.1} parent=1 // pred_check
      _
    $region3: #{tpu_custom_call.1} parent=1 // pred_check_branch
      %17 = sbr.rel (0) target = $region5
    $region4: #{tpu_custom_call.1} parent=1 // pred_region
      %19 = vsyncadd [#allocation4], 0
      %s21 = sshll.u32 %s0, 4
      %s22 = int_to_ptr.hbm [resolvable:$true] %s21
      %s23 = sshll.u32 [#allocation3], 4
      %s24 = int_to_ptr.vmem [resolvable:$true] %s23
      %26 = dma.hbm_to_vmem [thread:$0]  %s22, 128, %s24, [#allocation4]
    $region5: #{tpu_custom_call.1} parent=1 // pred_fallthru
      _
    // Predicated region
    $region6: #{tpu_custom_call.1} parent=1 // pred_check
      _
    $region7: #{tpu_custom_call.1} parent=1 // pred_check_branch
      %28 = sbr.rel (0) target = $region9
    $region8: #{tpu_custom_call.1} parent=1 // pred_region
      %30 = vsyncadd [#allocation7], 0
      %s31 = sshll.u32 %s1, 4
      %s32 = int_to_ptr.hbm [resolvable:$true] %s31
      %s33 = sshll.u32 [#allocation6], 4
      %s34 = int_to_ptr.vmem [resolvable:$true] %s33
      %39 = dma.hbm_to_vmem [thread:$0]  %s32, 128, %s34, [#allocation7], 64, 64, 4
    $region9: #{tpu_custom_call.1} parent=1 // pred_fallthru
      _
    // Predicated region
    $region10: #{tpu_custom_call.1} parent=1 // pred_check
      _
    $region11: #{tpu_custom_call.1} parent=1 // pred_check_branch
      %41 = sbr.rel (0) target = $region13
    $region12: #{tpu_custom_call.1} parent=1 // pred_region
      _
    $region13: #{tpu_custom_call.1} parent=1 // pred_fallthru
      _
    // Predicated region
    $region14: #{tpu_custom_call.1} parent=1 // pred_check
      _
    $region15: #{tpu_custom_call.1} parent=1 // pred_check_branch
      %43 = sbr.rel (0) target = $region17
    $region16: #{tpu_custom_call.1} parent=1 // pred_region
      %45 = vsyncadd [#allocation7], 0
      %s46 = sshll.u32 %s3, 4
      %s47 = int_to_ptr.hbm [resolvable:$true] %s46
      %s48 = sshll.u32 [#allocation8], 4
      %s49 = int_to_ptr.vmem [resolvable:$true] %s48
      %54 = dma.hbm_to_vmem [thread:$0]  %s47, 512, %s49, [#allocation7], 64, 64, 4
    $region17: #{tpu_custom_call.1} parent=1 // pred_fallthru
      _
    // Predicated region
    $region18: #{tpu_custom_call.1} parent=1 // pred_check
      _
    $region19: #{tpu_custom_call.1} parent=1 // pred_check_branch
      %56 = sbr.rel (0) target = $region21
    $region20: #{tpu_custom_call.1} parent=1 // pred_region
      _
    $region21: #{tpu_custom_call.1} parent=1 // pred_fallthru
      _
    // Predicated region
    $region22: #{tpu_custom_call.1} parent=1 // pred_check
      _
    $region23: #{tpu_custom_call.1} parent=1 // pred_check_branch
      %58 = sbr.rel (0) target = $region25
    $region24: #{tpu_custom_call.1} parent=1 // pred_region
      _
    $region25: #{tpu_custom_call.1} parent=1 // pred_fallthru
      _
    // Predicated region
    $region26: #{tpu_custom_call.1} parent=1 // pred_check
      _
    $region27: #{tpu_custom_call.1} parent=1 // pred_check_branch
      %60 = sbr.rel (0) target = $region29
    $region28: #{tpu_custom_call.1} parent=1 // pred_region
      _
    $region29: #{tpu_custom_call.1} parent=1 // pred_fallthru
      _
    // Predicated region
    $region30: #{tpu_custom_call.1} parent=1 // pred_check
      _
    $region31: #{tpu_custom_call.1} parent=1 // pred_check_branch
      %62 = sbr.rel (0) target = $region33
    $region32: #{tpu_custom_call.1} parent=1 // pred_region
      %64 = dma.done [#allocation4], 128
    $region33: #{tpu_custom_call.1} parent=1 // pred_fallthru
      _
    // Predicated region
    $region34: #{tpu_custom_call.1} parent=1 // pred_check
      _
    $region35: #{tpu_custom_call.1} parent=1 // pred_check_branch
      %66 = sbr.rel (0) target = $region37
    $region36: #{tpu_custom_call.1} parent=1 // pred_region
      %68 = dma.done [#allocation7], 128
    $region37: #{tpu_custom_call.1} parent=1 // pred_fallthru
      _
    // Predicated region
    $region38: #{tpu_custom_call.1} parent=1 // pred_check
      _
    $region39: #{tpu_custom_call.1} parent=1 // pred_check_branch
      %70 = sbr.rel (0) target = $region41
    $region40: #{tpu_custom_call.1} parent=1 // pred_region
      %72 = dma.done [#allocation7], 512
    $region41: #{tpu_custom_call.1} parent=1 // pred_fallthru
      _
    %v74 = vld [vmem:[#allocation3] sm:$0xff]
    %v75 = vpack.c.bf16 %v74, %v74
    %v76 = vld [vmem:[#allocation6] sm:$0xf]
    %v77 = vld [vmem:[#allocation6 + $0x4] sm:$0xf]
    %v78 = vld [vmem:[%s2] sm:$0x1]
    %v80 = vperm.slane %v78, 0
    %v84 = vunpack.c.l.b16 %v76
    %v85 = vunpack.c.l.b16 %v77
    %v86 = vpack.c.b16 %v85, %v84
    %vm88 = vcmask 130048
    %v90 = vsel %vm88, %v75, 0
    %92 = vmatpush.bf16.msra.mxu0 0
    %93 = vmatpush.bf16.msra.mxu0 0
    %94 = vmatpush.bf16.msra.mxu0 0
    %95 = vmatpush.bf16.msra.mxu0 0
    %96 = vmatpush.bf16.msra.mxu0 0
    %97 = vmatpush.bf16.msra.mxu0 0
    %98 = vmatpush.bf16.msra.mxu0 0
    %99 = vmatpush.bf16.msra.mxu0 %v86
    %100 = vmatmul.bf16.gmra.mxu0 %v90
    %v101 = vpop.f32.mrf.mxu0
    %v102 = vadd.f32 %v80, %v101
    %v103 = vpop.f32.mrf.mxu0
    %104 = vdwg.mxu0
    %v105 = vmax.f32 %v102, 0.0
    %v106 = vpack.c.bf16 %v105, %v105
    %v107 = vld [vmem:[#allocation8] sm:$0xf]
    %v108 = vld [vmem:[#allocation8 + $0x4] sm:$0xf]
    %v109 = vld [vmem:[#allocation8 + $0x8] sm:$0xf]
    %v110 = vld [vmem:[#allocation8 + $0xc] sm:$0xf]
    %v111 = vld [vmem:[#allocation8 + $0x10] sm:$0xf]
    %v112 = vld [vmem:[#allocation8 + $0x14] sm:$0xf]
    %v113 = vld [vmem:[#allocation8 + $0x18] sm:$0xf]
    %v114 = vld [vmem:[#allocation8 + $0x1c] sm:$0xf]
    %v115 = vld [vmem:[%s4] sm:$0x1]
    %v117 = vperm.slane %v115, 0
    %v127 = vunpack.c.l.b16 %v107
    %v128 = vunpack.c.l.b16 %v108
    %v129 = vunpack.c.l.b16 %v109
    %v130 = vunpack.c.l.b16 %v110
    %v131 = vunpack.c.l.b16 %v111
    %v132 = vunpack.c.l.b16 %v112
    %v133 = vunpack.c.l.b16 %v113
    %v134 = vunpack.c.l.b16 %v114
    %v135 = vpack.c.b16 %v128, %v127
    %v136 = vpack.c.b16 %v130, %v129
    %v137 = vpack.c.b16 %v132, %v131
    %v138 = vpack.c.b16 %v134, %v133
    %vm143 = vcmask 523264
    %v145 = vsel %vm143, %v106, 0
    %147 = vmatpush.bf16.msra.mxu0 0
    %148 = vmatpush.bf16.msra.mxu0 0
    %149 = vmatpush.bf16.msra.mxu0 0
    %150 = vmatpush.bf16.msra.mxu0 0
    %151 = vmatpush.bf16.msra.mxu0 %v138
    %152 = vmatpush.bf16.msra.mxu0 %v137
    %153 = vmatpush.bf16.msra.mxu0 %v136
    %154 = vmatpush.bf16.msra.mxu0 %v135
    %155 = vmatmul.bf16.gmra.mxu0 %v145
    %v156 = vpop.f32.mrf.mxu0
    %v157 = vadd.f32 %v117, %v156
    %v158 = vpop.f32.mrf.mxu0
    %159 = vdwg.mxu0
    %v160 = vmax.f32 %v157, 0.0
    %v161 = vld [vmem:[%s5] sm:$0x1]
    %v163 = vperm.slane %v161, 0
    %v165 = vmul.f32 %v160, %v163
    %v166 = vsel %vm143, %v165, 0.0
    %167 = vadd.xlane.f32.xlu0 %v166
    %v168 = vpop.xlane.xlu0 %167
    %s169 = sld [smem:[#allocation2]]
    %v170 = vstv %s169
    %v171 = vadd.f32 %v168, %v170
    %v173 = vlaneseq
    %v174 = vand.u32 %v173, 127
    %v175 = vperm.slane %v171, %v174
    %vm177 = vcmask 57344
    %178 = vst.msk [vmem:[#allocation9] sm:$0x1] %vm177, %v175
    // Predicated region
    $region42: #{tpu_custom_call.1} parent=1 // pred_check
      _
    $region43: #{tpu_custom_call.1} parent=1 // pred_check_branch
      %180 = sbr.rel (0) target = $region45
    $region44: #{tpu_custom_call.1} parent=1 // pred_region
      %182 = vsyncadd [#allocation5], 0
      %s184 = sshll.u32 [#allocation9], 4
      %s185 = int_to_ptr.vmem [resolvable:$true] %s184
      %s186 = sshll.u32 %s7, 4
      %s187 = int_to_ptr.hbm [resolvable:$true] %s186
      %189 = dma.vmem_to_hbm [thread:$0]  %s185, 16, %s187, [#allocation5]
    $region45: #{tpu_custom_call.1} parent=1 // pred_fallthru
      _
    // Predicated region
    $region46: #{tpu_custom_call.1} parent=1 // pred_check
      _
    $region47: #{tpu_custom_call.1} parent=1 // pred_check_branch
      %191 = sbr.rel (0) target = $region49
    $region48: #{tpu_custom_call.1} parent=1 // pred_region
      %193 = dma.done [#allocation5], 16
    $region49: #{tpu_custom_call.1} parent=1 // pred_fallthru
      _
    %194 = vsyncpa [#allocation4], 1
    %195 = vsyncpa [#allocation7], 1
    %196 = vsyncpa [#allocation5], 1

</llo_original>
